<compile_context>
chip_gen: v5e
topology: v5e:2x2
jax: 0.10.0
libtpu: 0.0.40
codegen_flags: <defaults>
</compile_context>

<pallas_src>
import jax
import jax.numpy as jnp
from jax import lax
from jax.experimental import pallas as pl
from jax.experimental.pallas import tpu as pltpu


def _round_up(x, m):
    return (x + m - 1) // m * m


def _mmloss_kernel(b_ref, xn_ref, o_ref):
    # b_ref:  SMEM (1,) int32 scalar-prefetch arg (actual batch size)
    # xn_ref: (bp, dp) pre-normalized rows (resident, constant block index)
    # o_ref:  (tm, 1)  per-row losses for this row tile
    i = pl.program_id(0)
    tm = o_ref.shape[0]
    bp = xn_ref.shape[0]
    b = b_ref[0]

    row_start = pl.multiple_of(i * tm, tm)
    xr = xn_ref[pl.ds(row_start, tm), :]                       # (tm, dp) rows of this tile

    # cosine similarities of this row tile against all rows: one (tm, bp) MXU matmul
    dots = lax.dot_general(xr, xn_ref[...], (((1,), (1,)), ((), ())),
                           preferred_element_type=jnp.float32)

    col = lax.broadcasted_iota(jnp.int32, (tm, bp), 1)                 # global column id
    grow = row_start + lax.broadcasted_iota(jnp.int32, (tm, 1), 0)     # (tm,1) global row id
    pair = grow ^ 1                                                    # positive column per row

    # fused 1/temperature (x20), constant softmax shift (-20, since sim <= 20) and
    # diagonal / padded-column mask: single select, exp(masked) == 0 exactly
    mask = jnp.logical_or(col == grow, col >= b)
    z = jnp.where(mask, -2e13, dots * 20.0 - 20.0)

    lse = jnp.log(jnp.sum(jnp.exp(z), axis=-1, keepdims=True))                     # (tm, 1)
    picked = jnp.sum(jnp.where(col == pair, dots, 0.0), axis=-1,
                     keepdims=True) * 20.0 - 20.0                                  # (tm, 1)

    # per-row loss = logsumexp(sim) - sim[pair]; padded rows contribute 0
    o_ref[...] = jnp.where(grow < b, lse - picked, 0.0)


def mm_loss(predict, *, tm=None, use_bf16_mxu=False):
    """predict: (B, D) float array, B even (paired positives). Returns scalar f32 loss."""
    x = jnp.asarray(predict)
    b, d = x.shape
    assert b % 2 == 0, "MMLoss requires an even batch size (rows form positive pairs)."

    # --- hoisted normalization (matches F.cosine_similarity eps=1e-8) ------------------
    x_f = x.astype(jnp.float32)
    inv = lax.rsqrt(jnp.maximum(jnp.sum(x_f * x_f, axis=-1, keepdims=True), 1e-16))
    mxu_dtype = jnp.bfloat16 if (x.dtype == jnp.bfloat16 or use_bf16_mxu) else jnp.float32
    xn = (x_f * inv).astype(mxu_dtype)

    # --- chip-aware sizing --------------------------------------------------------------
    try:
        phys_vmem = int(getattr(pltpu.get_tpu_info(), "vmem_capacity_bytes", 64 * 2**20))
    except Exception:
        phys_vmem = 64 * 2**20
    vmem_cap = min(100 * 2**20, max(16 * 2**20, phys_vmem - 16 * 2**20))

    dp = _round_up(max(d, 1), 128)
    bp = _round_up(b, 128)
    if tm is None:
        tm = 512 if phys_vmem >= 100 * 2**20 else 256   # bigger row tile on 128 MiB parts
    tm = min(tm, bp)
    bp = _round_up(bp, tm)
    num_tiles = bp // tm

    xn = jnp.pad(xn, ((0, bp - b), (0, dp - d)))        # zero rows/cols are masked in-kernel
    b_smem = jnp.array([b], dtype=jnp.int32)

    itemsize = jnp.dtype(mxu_dtype).itemsize
    cost = pl.CostEstimate(flops=2 * b * b * d, transcendentals=b * b,
                           bytes_accessed=bp * dp * itemsize + bp * 4)

    def build(single_buffer_cols):
        col_kwargs = {}
        if single_buffer_cols and hasattr(pl, "Buffered"):
            col_kwargs["pipeline_mode"] = pl.Buffered(1)
        col_copies = 1 if col_kwargs else 2
        est = (col_copies * bp * dp * itemsize    # resident column operand
               + tm * dp * itemsize               # row-tile slice
               + 6 * tm * bp * 4                  # (tm, bp) f32 temporaries
               + 4 * tm * 4)                      # (tm, 1) output blocks
        vmem_limit = int(max(8 * 2**20, min(vmem_cap, 2 * est)))
        return pl.pallas_call(
            _mmloss_kernel,
            out_shape=jax.ShapeDtypeStruct((bp, 1), jnp.float32),
            grid_spec=pltpu.PrefetchScalarGridSpec(
                num_scalar_prefetch=1,
                grid=(num_tiles,),
                in_specs=[
                    # full pre-normalized operand, constant block index (resident)
                    pl.BlockSpec((bp, dp), lambda i, b_r: (0, 0), **col_kwargs),
                ],
                out_specs=pl.BlockSpec((tm, 1), lambda i, b_r: (i, 0)),
            ),
            compiler_params=pltpu.CompilerParams(
                dimension_semantics=("parallel",),      # row tiles independent -> megacore
                vmem_limit_bytes=vmem_limit),
            cost_estimate=cost,
        )

    try:
        per_row = build(True)(b_smem, xn)
    except Exception:
        # pl.Buffered(1) pipeline hint unsupported on this jax/backend:
        # fall back to the default double-buffered resident operand (correctness identical).
        per_row = build(False)(b_smem, xn)

    return jnp.sum(per_row) / b


def mm_loss_ref(predict):
    """Pure-JAX reference matching the PyTorch forward, for verification."""
    x = predict.astype(jnp.float32)
    b = x.shape[0]
    y_true = jnp.arange(b)
    y_shift = y_true - (y_true % 2) * 2 + 1
    tgt = (y_true[None, :] == y_shift[:, None]).astype(jnp.float32)
    norm = jnp.maximum(jnp.linalg.norm(x, axis=-1, keepdims=True), 1e-8)
    sim = (x @ x.T) / (norm * norm.T)
    sim = sim - jnp.eye(b) * 1e12
    sim = sim / 0.05
    logp = jax.nn.log_softmax(sim, axis=-1)
    return -jnp.sum(tgt * logp) / b


if __name__ == "__main__":
    key = jax.random.PRNGKey(0)
    B, D = 8, 32  # batch must be even (paired positives); small synthetic shapes
    predict = jax.random.normal(key, (B, D), dtype=jnp.float32)

    loss = mm_loss(predict)
    loss = jax.block_until_ready(loss)

    ref = mm_loss_ref(predict)
    assert jnp.allclose(loss, ref, rtol=1e-4, atol=1e-4), (loss, ref)

    print("KERNEL_OK")
</pallas_src>

<mosaic_0001>
module attributes {stable_mosaic.version = 11 : i64} {
  func.func @_mmloss_kernel(%arg0: i32, %arg1: memref<1xi32, #tpu.memory_space<smem>>, %arg2: memref<128x128xf32, #tpu.memory_space<vmem>>, %arg3: memref<128x1xf32, #tpu.memory_space<vmem>>) attributes {dimension_semantics = [#tpu.dimension_semantics<parallel>], iteration_bounds = array<i64: 1>, scalar_prefetch = 1 : i64, scratch_operands = 0 : i64, tpu.core_type = #tpu.core_type<tc>, window_params = [{pipeline_mode = #tpu.pipeline_mode<synchronous>, transform_indices = @transform_0, window_bounds = array<i64: 128, 128>}, {transform_indices = @transform_1, window_bounds = array<i64: 128, 1>}]} {
    %c0 = arith.constant 0 : index
    %0 = memref.load %arg1[%c0] : memref<1xi32, #tpu.memory_space<smem>>
    %c128_i32 = arith.constant 128 : i32
    %1 = arith.muli %arg0, %c128_i32 : i32
    %2 = tpu.assume_multiple %1, 128 : i32
    %3 = arith.index_cast %2 : i32 to index
    %c0_0 = arith.constant 0 : index
    %4 = vector.load %arg2[%3, %c0_0] : memref<128x128xf32, #tpu.memory_space<vmem>>, vector<128x128xf32>
    %c0_1 = arith.constant 0 : index
    %c0_2 = arith.constant 0 : index
    %5 = vector.load %arg2[%c0_1, %c0_2] : memref<128x128xf32, #tpu.memory_space<vmem>>, vector<128x128xf32>
    %cst = arith.constant dense<0.000000e+00> : vector<128x128xf32>
    %6 = tpu.matmul %4, %5, %cst {dimension_numbers = #tpu.dot_dimension_numbers<[1], [1], [0], [0], [0, 0, 1, 0], [], []>} : vector<128x128xf32>, vector<128x128xf32>, vector<128x128xf32> -> vector<128x128xf32>
    %7 = tpu.iota {dimensions = array<i32: 1>} : vector<128x128xi32>
    %8 = tpu.iota {dimensions = array<i32: 0>} : vector<128x1xi32>
    %9 = vector.broadcast %2 : i32 to vector<128x1xi32>
    %10 = arith.addi %9, %8 : vector<128x1xi32>
    %c1_i32 = arith.constant 1 : i32
    %11 = vector.broadcast %c1_i32 : i32 to vector<128x1xi32>
    %12 = arith.xori %10, %11 : vector<128x1xi32>
    %13 = vector.broadcast %10 : vector<128x1xi32> to vector<128x128xi32>
    %14 = arith.cmpi eq, %7, %13 : vector<128x128xi32>
    %15 = vector.broadcast %0 : i32 to vector<128x128xi32>
    %16 = arith.cmpi sge, %7, %15 : vector<128x128xi32>
    %17 = arith.ori %14, %16 : vector<128x128xi1>
    %cst_3 = arith.constant 2.000000e+01 : f32
    %18 = vector.broadcast %cst_3 : f32 to vector<128x128xf32>
    %19 = arith.mulf %6, %18 : vector<128x128xf32>
    %cst_4 = arith.constant 2.000000e+01 : f32
    %20 = vector.broadcast %cst_4 : f32 to vector<128x128xf32>
    %21 = arith.subf %19, %20 : vector<128x128xf32>
    %cst_5 = arith.constant -2.000000e+13 : f32
    %22 = vector.broadcast %cst_5 : f32 to vector<128x128xf32>
    %23 = arith.select %17, %22, %21 : vector<128x128xi1>, vector<128x128xf32>
    %24 = math.exp %23 : vector<128x128xf32>
    %cst_6 = arith.constant dense<0.000000e+00> : vector<128xf32>
    %25 = vector.multi_reduction <add>, %24, %cst_6 [1] : vector<128x128xf32> to vector<128xf32>
    %26 = vector.shape_cast %25 : vector<128xf32> to vector<128x1xf32>
    %27 = math.log %26 : vector<128x1xf32>
    %28 = vector.broadcast %12 : vector<128x1xi32> to vector<128x128xi32>
    %29 = arith.cmpi eq, %7, %28 : vector<128x128xi32>
    %cst_7 = arith.constant 0.000000e+00 : f32
    %30 = vector.broadcast %cst_7 : f32 to vector<128x128xf32>
    %31 = arith.select %29, %6, %30 : vector<128x128xi1>, vector<128x128xf32>
    %cst_8 = arith.constant dense<0.000000e+00> : vector<128xf32>
    %32 = vector.multi_reduction <add>, %31, %cst_8 [1] : vector<128x128xf32> to vector<128xf32>
    %33 = vector.shape_cast %32 : vector<128xf32> to vector<128x1xf32>
    %cst_9 = arith.constant 2.000000e+01 : f32
    %34 = vector.broadcast %cst_9 : f32 to vector<128x1xf32>
    %35 = arith.mulf %33, %34 : vector<128x1xf32>
    %cst_10 = arith.constant 2.000000e+01 : f32
    %36 = vector.broadcast %cst_10 : f32 to vector<128x1xf32>
    %37 = arith.subf %35, %36 : vector<128x1xf32>
    %38 = vector.broadcast %0 : i32 to vector<128x1xi32>
    %39 = arith.cmpi slt, %10, %38 : vector<128x1xi32>
    %40 = arith.subf %27, %37 : vector<128x1xf32>
    %cst_11 = arith.constant 0.000000e+00 : f32
    %41 = vector.broadcast %cst_11 : f32 to vector<128x1xf32>
    %42 = arith.select %39, %40, %41 : vector<128x1xi1>, vector<128x1xf32>
    %c0_12 = arith.constant 0 : index
    %c0_13 = arith.constant 0 : index
    %43 = vector.load %arg3[%c0_12, %c0_13] : memref<128x1xf32, #tpu.memory_space<vmem>>, vector<128x1xf32>
    tpu.vector_store %arg3[%c0_12, %c0_13], %42 {strides = array<i32>} : memref<128x1xf32, #tpu.memory_space<vmem>>, vector<128x1xf32>,
    return
  }
  func.func @transform_0(%arg0: i32, %arg1: memref<1xi32, #tpu.memory_space<smem>>) -> (i32, i32) {
    %c0_i32 = arith.constant 0 : i32
    %c0_i32_0 = arith.constant 0 : i32
    %c0_i32_1 = arith.constant 0 : i32
    return %c0_i32, %c0_i32_0 : i32, i32
  }
  func.func @transform_1(%arg0: i32, %arg1: memref<1xi32, #tpu.memory_space<smem>>) -> (i32, i32) {
    %c0_i32 = arith.constant 0 : i32
    %c0_i32_0 = arith.constant 0 : i32
    return %arg0, %c0_i32 : i32, i32
  }
}

module attributes {stable_mosaic.version = 11 : i64} {
  func.func @_mmloss_kernel(%arg0: i32, %arg1: memref<1xi32, #tpu.memory_space<smem>>, %arg2: memref<128x128xf32, #tpu.memory_space<vmem>>, %arg3: memref<128x1xf32, #tpu.memory_space<vmem>>) attributes {dimension_semantics = [#tpu.dimension_semantics<parallel>], iteration_bounds = array<i64: 1>, scalar_prefetch = 1 : i64, scratch_operands = 0 : i64, tpu.core_type = #tpu.core_type<tc>, window_params = [{pipeline_mode = #tpu.pipeline_mode<synchronous>, transform_indices = @transform_0, window_bounds = array<i64: 128, 128>}, {transform_indices = @transform_1, window_bounds = array<i64: 128, 1>}]} {
    %c0 = arith.constant 0 : index
    %0 = memref.load %arg1[%c0] : memref<1xi32, #tpu.memory_space<smem>>
    %c128_i32 = arith.constant 128 : i32
    %1 = arith.muli %arg0, %c128_i32 : i32
    %2 = tpu.assume_multiple %1, 128 : i32
    %3 = arith.index_cast %2 : i32 to index
    %c0_0 = arith.constant 0 : index
    %4 = vector.load %arg2[%3, %c0_0] : memref<128x128xf32, #tpu.memory_space<vmem>>, vector<128x128xf32>
    %c0_1 = arith.constant 0 : index
    %c0_2 = arith.constant 0 : index
    %5 = vector.load %arg2[%c0_1, %c0_2] : memref<128x128xf32, #tpu.memory_space<vmem>>, vector<128x128xf32>
    %cst = arith.constant dense<0.000000e+00> : vector<128x128xf32>
    %6 = tpu.matmul %4, %5, %cst {dimension_numbers = #tpu.dot_dimension_numbers<[1], [1], [0], [0], [0, 0, 1, 0], [], []>} : vector<128x128xf32>, vector<128x128xf32>, vector<128x128xf32> -> vector<128x128xf32>
    %7 = tpu.iota {dimensions = array<i32: 1>} : vector<128x128xi32>
    %8 = tpu.iota {dimensions = array<i32: 0>} : vector<128x1xi32>
    %9 = vector.broadcast %2 : i32 to vector<128x1xi32>
    %10 = arith.addi %9, %8 : vector<128x1xi32>
    %c1_i32 = arith.constant 1 : i32
    %11 = vector.broadcast %c1_i32 : i32 to vector<128x1xi32>
    %12 = arith.xori %10, %11 : vector<128x1xi32>
    %13 = vector.broadcast %10 : vector<128x1xi32> to vector<128x128xi32>
    %14 = arith.cmpi eq, %7, %13 : vector<128x128xi32>
    %15 = vector.broadcast %0 : i32 to vector<128x128xi32>
    %16 = arith.cmpi sge, %7, %15 : vector<128x128xi32>
    %17 = arith.ori %14, %16 : vector<128x128xi1>
    %cst_3 = arith.constant 2.000000e+01 : f32
    %18 = vector.broadcast %cst_3 : f32 to vector<128x128xf32>
    %19 = arith.mulf %6, %18 : vector<128x128xf32>
    %cst_4 = arith.constant 2.000000e+01 : f32
    %20 = vector.broadcast %cst_4 : f32 to vector<128x128xf32>
    %21 = arith.subf %19, %20 : vector<128x128xf32>
    %cst_5 = arith.constant -2.000000e+13 : f32
    %22 = vector.broadcast %cst_5 : f32 to vector<128x128xf32>
    %23 = arith.select %17, %22, %21 : vector<128x128xi1>, vector<128x128xf32>
    %24 = math.exp %23 : vector<128x128xf32>
    %cst_6 = arith.constant dense<0.000000e+00> : vector<128xf32>
    %25 = vector.multi_reduction <add>, %24, %cst_6 [1] : vector<128x128xf32> to vector<128xf32>
    %26 = vector.shape_cast %25 : vector<128xf32> to vector<128x1xf32>
    %27 = math.log %26 : vector<128x1xf32>
    %28 = vector.broadcast %12 : vector<128x1xi32> to vector<128x128xi32>
    %29 = arith.cmpi eq, %7, %28 : vector<128x128xi32>
    %cst_7 = arith.constant 0.000000e+00 : f32
    %30 = vector.broadcast %cst_7 : f32 to vector<128x128xf32>
    %31 = arith.select %29, %6, %30 : vector<128x128xi1>, vector<128x128xf32>
    %cst_8 = arith.constant dense<0.000000e+00> : vector<128xf32>
    %32 = vector.multi_reduction <add>, %31, %cst_8 [1] : vector<128x128xf32> to vector<128xf32>
    %33 = vector.shape_cast %32 : vector<128xf32> to vector<128x1xf32>
    %cst_9 = arith.constant 2.000000e+01 : f32
    %34 = vector.broadcast %cst_9 : f32 to vector<128x1xf32>
    %35 = arith.mulf %33, %34 : vector<128x1xf32>
    %cst_10 = arith.constant 2.000000e+01 : f32
    %36 = vector.broadcast %cst_10 : f32 to vector<128x1xf32>
    %37 = arith.subf %35, %36 : vector<128x1xf32>
    %38 = vector.broadcast %0 : i32 to vector<128x1xi32>
    %39 = arith.cmpi slt, %10, %38 : vector<128x1xi32>
    %40 = arith.subf %27, %37 : vector<128x1xf32>
    %cst_11 = arith.constant 0.000000e+00 : f32
    %41 = vector.broadcast %cst_11 : f32 to vector<128x1xf32>
    %42 = arith.select %39, %40, %41 : vector<128x1xi1>, vector<128x1xf32>
    %c0_12 = arith.constant 0 : index
    %c0_13 = arith.constant 0 : index
    %43 = vector.load %arg3[%c0_12, %c0_13] : memref<128x1xf32, #tpu.memory_space<vmem>>, vector<128x1xf32>
    tpu.vector_store %arg3[%c0_12, %c0_13], %42 {strides = array<i32>} : memref<128x1xf32, #tpu.memory_space<vmem>>, vector<128x1xf32>,
    return
  }
  func.func @transform_0(%arg0: i32, %arg1: memref<1xi32, #tpu.memory_space<smem>>) -> (i32, i32) {
    %c0_i32 = arith.constant 0 : i32
    %c0_i32_0 = arith.constant 0 : i32
    %c0_i32_1 = arith.constant 0 : i32
    return %c0_i32, %c0_i32_0 : i32, i32
  }
  func.func @transform_1(%arg0: i32, %arg1: memref<1xi32, #tpu.memory_space<smem>>) -> (i32, i32) {
    %c0_i32 = arith.constant 0 : i32
    %c0_i32_0 = arith.constant 0 : i32
    return %arg0, %c0_i32 : i32, i32
  }
}

</mosaic_0001>

<llo_original>
// kernel: tpu_custom_call.1
$region0: #{tpu_custom_call.1}
  #allocation0 [shape = 'u32[]', space=smem, size = 0x4, offset = 0x4, fixed_abs, tag = 'smem constant byte address 0x4 - core index']
  #allocation1 [shape = 'u32[72,128]{1,0:T(1,128)}', space=vmem, size = 0x9000, scoped, tag = 'internal scratch']
  #allocation2 [shape = 's32[1]{0}', space=sflag, size = 0x4, scoped, tag = 'scoped memory for tpu_custom_call.1']
  #allocation3 [shape = 's32[1]{0:T(128)S(6)}', space=smem, size = 0x200, scoped, tag = 'prefetched SMEM operand 0']
  %s0 = inlined_call_operand.<no memory space> [shape: s32[1], index: 0, kind: input, shape index: {}]
  %s1 = inlined_call_operand.hbm [shape: f32[128,128], index: 1, kind: input, shape index: {}]
  %s2 = inlined_call_operand.vmem [shape: f32[128,1], index: 2, kind: output, shape index: {}]
  %s3 = sld [smem:[#allocation0]]
  $region18: #{tpu_custom_call.1} parent=0
    _
  %s5 = ssub.s32 1, %s3
  %s6 = scalar_select 0, %s5, %s3
  %7 = sst [smem:[#allocation3]] %s0
  $region1: #{tpu_custom_call.1} parent=0
    #allocation4 [shape = 'u8[65536]{0}', space=vmem, size = 0x10000, scoped, tag = 'input window, operand 1, single buffered']
    #allocation5 [shape = 's32[1]{0}', space=sflag, size = 0x4, scoped, tag = 'scoped memory for tpu_custom_call.1']
    %8 = vsyncpa [#allocation5], 0
    // Predicated region
    $region2: #{tpu_custom_call.1} parent=1 // pred_check
      _
    $region3: #{tpu_custom_call.1} parent=1 // pred_check_branch
      %10 = sbr.rel (0) target = $region5
    $region4: #{tpu_custom_call.1} parent=1 // pred_region
      %12 = vsyncadd [#allocation5], 0
      %s13 = sshll.u32 %s1, 4
      %s14 = int_to_ptr.hbm [resolvable:$true] %s13
      %s15 = sshll.u32 [#allocation4], 4
      %s16 = int_to_ptr.vmem [resolvable:$true] %s15
      %21 = dma.hbm_to_vmem [thread:$0]  %s14, 2048, %s16, [#allocation5], 128, 128, 8
    $region5: #{tpu_custom_call.1} parent=1 // pred_fallthru
      _
    // Predicated region
    $region6: #{tpu_custom_call.1} parent=1 // pred_check
      _
    $region7: #{tpu_custom_call.1} parent=1 // pred_check_branch
      %23 = sbr.rel (0) target = $region9
    $region8: #{tpu_custom_call.1} parent=1 // pred_region
      %25 = dma.done [#allocation5], 2048
    $region9: #{tpu_custom_call.1} parent=1 // pred_fallthru
      _
    %s26 = sld [smem:[#allocation3]]
    %s27 = smul.u32 0, 128
    %s28 = scalar_lea.vmem [#allocation4], %s27
    %v29 = vld [vmem:[%s28] sm:$0xff]
    %v30 = vld [vmem:[%s28 + $0x8] sm:$0xff]
    %v31 = vld [vmem:[%s28 + $0x10] sm:$0xff]
    %v32 = vld [vmem:[%s28 + $0x18] sm:$0xff]
    %v33 = vld [vmem:[%s28 + $0x20] sm:$0xff]
    %v34 = vld [vmem:[%s28 + $0x28] sm:$0xff]
    %v35 = vld [vmem:[%s28 + $0x30] sm:$0xff]
    %v36 = vld [vmem:[%s28 + $0x38] sm:$0xff]
    %v37 = vld [vmem:[%s28 + $0x40] sm:$0xff]
    %v38 = vld [vmem:[%s28 + $0x48] sm:$0xff]
    %v39 = vld [vmem:[%s28 + $0x50] sm:$0xff]
    %v40 = vld [vmem:[%s28 + $0x58] sm:$0xff]
    %v41 = vld [vmem:[%s28 + $0x60] sm:$0xff]
    %v42 = vld [vmem:[%s28 + $0x68] sm:$0xff]
    %v43 = vld [vmem:[%s28 + $0x70] sm:$0xff]
    %v44 = vld [vmem:[%s28 + $0x78] sm:$0xff]
    %v45 = vld [vmem:[#allocation4] sm:$0xff]
    %v46 = vld [vmem:[#allocation4 + $0x8] sm:$0xff]
    %v47 = vld [vmem:[#allocation4 + $0x10] sm:$0xff]
    %v48 = vld [vmem:[#allocation4 + $0x18] sm:$0xff]
    %v49 = vld [vmem:[#allocation4 + $0x20] sm:$0xff]
    %v50 = vld [vmem:[#allocation4 + $0x28] sm:$0xff]
    %v51 = vld [vmem:[#allocation4 + $0x30] sm:$0xff]
    %v52 = vld [vmem:[#allocation4 + $0x38] sm:$0xff]
    %v53 = vld [vmem:[#allocation4 + $0x40] sm:$0xff]
    %v54 = vld [vmem:[#allocation4 + $0x48] sm:$0xff]
    %v55 = vld [vmem:[#allocation4 + $0x50] sm:$0xff]
    %v56 = vld [vmem:[#allocation4 + $0x58] sm:$0xff]
    %v57 = vld [vmem:[#allocation4 + $0x60] sm:$0xff]
    %v58 = vld [vmem:[#allocation4 + $0x68] sm:$0xff]
    %v59 = vld [vmem:[#allocation4 + $0x70] sm:$0xff]
    %v60 = vld [vmem:[#allocation4 + $0x78] sm:$0xff]
    %61 = vmatpush.xpose.msra.mxu0 %v60
    %62 = vmatpush.xpose.msra.mxu0 %v59
    %63 = vmatpush.xpose.msra.mxu0 %v58
    %64 = vmatpush.xpose.msra.mxu0 %v57
    %65 = vmatpush.xpose.msra.mxu0 %v56
    %66 = vmatpush.xpose.msra.mxu0 %v55
    %67 = vmatpush.xpose.msra.mxu0 %v54
    %68 = vmatpush.xpose.msra.mxu0 %v53
    %69 = vmatpush.xpose.msra.mxu0 %v52
    %70 = vmatpush.xpose.msra.mxu0 %v51
    %71 = vmatpush.xpose.msra.mxu0 %v50
    %72 = vmatpush.xpose.msra.mxu0 %v49
    %73 = vmatpush.xpose.msra.mxu0 %v48
    %74 = vmatpush.xpose.msra.mxu0 %v47
    %75 = vmatpush.xpose.msra.mxu0 %v46
    %76 = vmatpush.xpose.msra.mxu0 %v45
    %77 = vmatmul.f32.gmra.mxu0 %v29
    %v78 = vpop.f32.mrf.mxu0
    %v79 = vadd.f32 0.0, %v78
    %80 = vmatmul.f32.gmra.mxu0 %v30
    %v81 = vpop.f32.mrf.mxu0
    %v82 = vadd.f32 0.0, %v81
    %83 = vmatmul.f32.gmra.mxu0 %v31
    %v84 = vpop.f32.mrf.mxu0
    %v85 = vadd.f32 0.0, %v84
    %86 = vmatmul.f32.gmra.mxu0 %v32
    %v87 = vpop.f32.mrf.mxu0
    %v88 = vadd.f32 0.0, %v87
    %89 = vmatmul.f32.gmra.mxu0 %v33
    %v90 = vpop.f32.mrf.mxu0
    %v91 = vadd.f32 0.0, %v90
    %92 = vmatmul.f32.gmra.mxu0 %v34
    %v93 = vpop.f32.mrf.mxu0
    %v94 = vadd.f32 0.0, %v93
    %95 = vmatmul.f32.gmra.mxu0 %v35
    %v96 = vpop.f32.mrf.mxu0
    %v97 = vadd.f32 0.0, %v96
    %98 = vmatmul.f32.gmra.mxu0 %v36
    %v99 = vpop.f32.mrf.mxu0
    %v100 = vadd.f32 0.0, %v99
    %101 = vmatmul.f32.gmra.mxu0 %v37
    %v102 = vpop.f32.mrf.mxu0
    %v103 = vadd.f32 0.0, %v102
    %104 = vmatmul.f32.gmra.mxu0 %v38
    %v105 = vpop.f32.mrf.mxu0
    %v106 = vadd.f32 0.0, %v105
    %107 = vmatmul.f32.gmra.mxu0 %v39
    %v108 = vpop.f32.mrf.mxu0
    %v109 = vadd.f32 0.0, %v108
    %110 = vmatmul.f32.gmra.mxu0 %v40
    %v111 = vpop.f32.mrf.mxu0
    %v112 = vadd.f32 0.0, %v111
    %113 = vmatmul.f32.gmra.mxu0 %v41
    %v114 = vpop.f32.mrf.mxu0
    %v115 = vadd.f32 0.0, %v114
    %116 = vmatmul.f32.gmra.mxu0 %v42
    %v117 = vpop.f32.mrf.mxu0
    %v118 = vadd.f32 0.0, %v117
    %119 = vmatmul.f32.gmra.mxu0 %v43
    %v120 = vpop.f32.mrf.mxu0
    %v121 = vadd.f32 0.0, %v120
    %122 = vmatmul.f32.gmra.mxu0 %v44
    %v123 = vpop.f32.mrf.mxu0
    %v124 = vadd.f32 0.0, %v123
    %125 = vdwg.mxu0
    %v126 = vlaneseq
    %v127 = vand.u32 %v126, 127
    %v128 = vlaneseq
    %v129 = vshrl.u32 %v128, 7
    %v130 = vadd.s32 %v129, 8
    %v131 = vadd.s32 %v129, 16
    %v132 = vadd.s32 %v129, 24
    %v133 = vadd.s32 %v129, 32
    %v134 = vadd.s32 %v129, 40
    %v135 = vadd.s32 %v129, 48
    %v136 = vadd.s32 %v129, 56
    %v137 = vadd.s32 %v129, 64
    %v138 = vadd.s32 %v129, 72
    %v139 = vadd.s32 %v129, 80
    %v140 = vadd.s32 %v129, 88
    %v141 = vadd.s32 %v129, 96
    %v142 = vadd.s32 %v129, 104
    %v143 = vadd.s32 %v129, 112
    %v144 = vadd.s32 %v129, 120
    %v145 = vstv %s27
    %v146 = vadd.s32 %v145, %v129
    %v147 = vadd.s32 %v145, %v130
    %v148 = vadd.s32 %v145, %v131
    %v149 = vadd.s32 %v145, %v132
    %v150 = vadd.s32 %v145, %v133
    %v151 = vadd.s32 %v145, %v134
    %v152 = vadd.s32 %v145, %v135
    %v153 = vadd.s32 %v145, %v136
    %v154 = vadd.s32 %v145, %v137
    %v155 = vadd.s32 %v145, %v138
    %v156 = vadd.s32 %v145, %v139
    %v157 = vadd.s32 %v145, %v140
    %v158 = vadd.s32 %v145, %v141
    %v159 = vadd.s32 %v145, %v142
    %v160 = vadd.s32 %v145, %v143
    %v161 = vadd.s32 %v145, %v144
    %v162 = vxor.u32 %v146, 1
    %v163 = vxor.u32 %v147, 1
    %v164 = vxor.u32 %v148, 1
    %v165 = vxor.u32 %v149, 1
    %v166 = vxor.u32 %v150, 1
    %v167 = vxor.u32 %v151, 1
    %v168 = vxor.u32 %v152, 1
    %v169 = vxor.u32 %v153, 1
    %v170 = vxor.u32 %v154, 1
    %v171 = vxor.u32 %v155, 1
    %v172 = vxor.u32 %v156, 1
    %v173 = vxor.u32 %v157, 1
    %v174 = vxor.u32 %v158, 1
    %v175 = vxor.u32 %v159, 1
    %v176 = vxor.u32 %v160, 1
    %v177 = vxor.u32 %v161, 1
    %vm178 = vcmp.eq.s32.totalorder %v127, %v146
    %vm179 = vcmp.eq.s32.totalorder %v127, %v147
    %vm180 = vcmp.eq.s32.totalorder %v127, %v148
    %vm181 = vcmp.eq.s32.totalorder %v127, %v149
    %vm182 = vcmp.eq.s32.totalorder %v127, %v150
    %vm183 = vcmp.eq.s32.totalorder %v127, %v151
    %vm184 = vcmp.eq.s32.totalorder %v127, %v152
    %vm185 = vcmp.eq.s32.totalorder %v127, %v153
    %vm186 = vcmp.eq.s32.totalorder %v127, %v154
    %vm187 = vcmp.eq.s32.totalorder %v127, %v155
    %vm188 = vcmp.eq.s32.totalorder %v127, %v156
    %vm189 = vcmp.eq.s32.totalorder %v127, %v157
    %vm190 = vcmp.eq.s32.totalorder %v127, %v158
    %vm191 = vcmp.eq.s32.totalorder %v127, %v159
    %vm192 = vcmp.eq.s32.totalorder %v127, %v160
    %vm193 = vcmp.eq.s32.totalorder %v127, %v161
    %v194 = vstv %s26
    %vm195 = vcmp.ge.s32.totalorder %v127, %v194
    %vm196 = vmor %vm178, %vm195
    %vm197 = vmor %vm179, %vm195
    %vm198 = vmor %vm180, %vm195
    %vm199 = vmor %vm181, %vm195
    %vm200 = vmor %vm182, %vm195
    %vm201 = vmor %vm183, %vm195
    %vm202 = vmor %vm184, %vm195
    %vm203 = vmor %vm185, %vm195
    %vm204 = vmor %vm186, %vm195
    %vm205 = vmor %vm187, %vm195
    %vm206 = vmor %vm188, %vm195
    %vm207 = vmor %vm189, %vm195
    %vm208 = vmor %vm190, %vm195
    %vm209 = vmor %vm191, %vm195
    %vm210 = vmor %vm192, %vm195
    %vm211 = vmor %vm193, %vm195
    %v212 = vmul.f32 %v79, 20.0
    %v213 = vmul.f32 %v82, 20.0
    %v214 = vmul.f32 %v85, 20.0
    %v215 = vmul.f32 %v88, 20.0
    %v216 = vmul.f32 %v91, 20.0
    %v217 = vmul.f32 %v94, 20.0
    %v218 = vmul.f32 %v97, 20.0
    %v219 = vmul.f32 %v100, 20.0
    %v220 = vmul.f32 %v103, 20.0
    %v221 = vmul.f32 %v106, 20.0
    %v222 = vmul.f32 %v109, 20.0
    %v223 = vmul.f32 %v112, 20.0
    %v224 = vmul.f32 %v115, 20.0
    %v225 = vmul.f32 %v118, 20.0
    %v226 = vmul.f32 %v121, 20.0
    %v227 = vmul.f32 %v124, 20.0
    %v228 = vsub.f32 %v212, 20.0
    %v229 = vsub.f32 %v213, 20.0
    %v230 = vsub.f32 %v214, 20.0
    %v231 = vsub.f32 %v215, 20.0
    %v232 = vsub.f32 %v216, 20.0
    %v233 = vsub.f32 %v217, 20.0
    %v234 = vsub.f32 %v218, 20.0
    %v235 = vsub.f32 %v219, 20.0
    %v236 = vsub.f32 %v220, 20.0
    %v237 = vsub.f32 %v221, 20.0
    %v238 = vsub.f32 %v222, 20.0
    %v239 = vsub.f32 %v223, 20.0
    %v240 = vsub.f32 %v224, 20.0
    %v241 = vsub.f32 %v225, 20.0
    %v242 = vsub.f32 %v226, 20.0
    %v243 = vsub.f32 %v227, 20.0
    %v244 = vsel %vm196, -2e+13, %v228
    %v245 = vsel %vm197, -2e+13, %v229
    %v246 = vsel %vm198, -2e+13, %v230
    %v247 = vsel %vm199, -2e+13, %v231
    %v248 = vsel %vm200, -2e+13, %v232
    %v249 = vsel %vm201, -2e+13, %v233
    %v250 = vsel %vm202, -2e+13, %v234
    %v251 = vsel %vm203, -2e+13, %v235
    %v252 = vsel %vm204, -2e+13, %v236
    %v253 = vsel %vm205, -2e+13, %v237
    %v254 = vsel %vm206, -2e+13, %v238
    %v255 = vsel %vm207, -2e+13, %v239
    %v256 = vsel %vm208, -2e+13, %v240
    %v257 = vsel %vm209, -2e+13, %v241
    %v258 = vsel %vm210, -2e+13, %v242
    %v259 = vsel %vm211, -2e+13, %v243
    %v260 = vmul.f32 %v244, 1.442695
    %v261 = vpow.pop %v260
    %v262 = vmul.f32 %v245, 1.442695
    %v263 = vpow.pop %v262
    %v264 = vmul.f32 %v246, 1.442695
    %v265 = vpow.pop %v264
    %v266 = vmul.f32 %v247, 1.442695
    %v267 = vpow.pop %v266
    %v268 = vmul.f32 %v248, 1.442695
    %v269 = vpow.pop %v268
    %v270 = vmul.f32 %v249, 1.442695
    %v271 = vpow.pop %v270
    %v272 = vmul.f32 %v250, 1.442695
    %v273 = vpow.pop %v272
    %v274 = vmul.f32 %v251, 1.442695
    %v275 = vpow.pop %v274
    %v276 = vmul.f32 %v252, 1.442695
    %v277 = vpow.pop %v276
    %v278 = vmul.f32 %v253, 1.442695
    %v279 = vpow.pop %v278
    %v280 = vmul.f32 %v254, 1.442695
    %v281 = vpow.pop %v280
    %v282 = vmul.f32 %v255, 1.442695
    %v283 = vpow.pop %v282
    %v284 = vmul.f32 %v256, 1.442695
    %v285 = vpow.pop %v284
    %v286 = vmul.f32 %v257, 1.442695
    %v287 = vpow.pop %v286
    %v288 = vmul.f32 %v258, 1.442695
    %v289 = vpow.pop %v288
    %v290 = vmul.f32 %v259, 1.442695
    %v291 = vpow.pop %v290
    %292 = vadd.xlane.f32.xlu0 %v261
    %v293 = vpop.xlane.xlu0 %292
    %294 = vadd.xlane.f32.xlu0 %v263
    %v295 = vpop.xlane.xlu0 %294
    %296 = vadd.xlane.f32.xlu0 %v265
    %v297 = vpop.xlane.xlu0 %296
    %298 = vadd.xlane.f32.xlu0 %v267
    %v299 = vpop.xlane.xlu0 %298
    %300 = vadd.xlane.f32.xlu0 %v269
    %v301 = vpop.xlane.xlu0 %300
    %302 = vadd.xlane.f32.xlu0 %v271
    %v303 = vpop.xlane.xlu0 %302
    %304 = vadd.xlane.f32.xlu0 %v273
    %v305 = vpop.xlane.xlu0 %304
    %306 = vadd.xlane.f32.xlu0 %v275
    %v307 = vpop.xlane.xlu0 %306
    %308 = vadd.xlane.f32.xlu0 %v277
    %v309 = vpop.xlane.xlu0 %308
    %310 = vadd.xlane.f32.xlu0 %v279
    %v311 = vpop.xlane.xlu0 %310
    %312 = vadd.xlane.f32.xlu0 %v281
    %v313 = vpop.xlane.xlu0 %312
    %314 = vadd.xlane.f32.xlu0 %v283
    %v315 = vpop.xlane.xlu0 %314
    %316 = vadd.xlane.f32.xlu0 %v285
    %v317 = vpop.xlane.xlu0 %316
    %318 = vadd.xlane.f32.xlu0 %v287
    %v319 = vpop.xlane.xlu0 %318
    %320 = vadd.xlane.f32.xlu0 %v289
    %v321 = vpop.xlane.xlu0 %320
    %322 = vadd.xlane.f32.xlu0 %v291
    %v323 = vpop.xlane.xlu0 %322
    %v324 = vlog2.pop %v293
    %v325 = vmul.f32 %v324, 0.6931472
    %v326 = vlog2.pop %v295
    %v327 = vmul.f32 %v326, 0.6931472
    %v328 = vlog2.pop %v297
    %v329 = vmul.f32 %v328, 0.6931472
    %v330 = vlog2.pop %v299
    %v331 = vmul.f32 %v330, 0.6931472
    %v332 = vlog2.pop %v301
    %v333 = vmul.f32 %v332, 0.6931472
    %v334 = vlog2.pop %v303
    %v335 = vmul.f32 %v334, 0.6931472
    %v336 = vlog2.pop %v305
    %v337 = vmul.f32 %v336, 0.6931472
    %v338 = vlog2.pop %v307
    %v339 = vmul.f32 %v338, 0.6931472
    %v340 = vlog2.pop %v309
    %v341 = vmul.f32 %v340, 0.6931472
    %v342 = vlog2.pop %v311
    %v343 = vmul.f32 %v342, 0.6931472
    %v344 = vlog2.pop %v313
    %v345 = vmul.f32 %v344, 0.6931472
    %v346 = vlog2.pop %v315
    %v347 = vmul.f32 %v346, 0.6931472
    %v348 = vlog2.pop %v317
    %v349 = vmul.f32 %v348, 0.6931472
    %v350 = vlog2.pop %v319
    %v351 = vmul.f32 %v350, 0.6931472
    %v352 = vlog2.pop %v321
    %v353 = vmul.f32 %v352, 0.6931472
    %v354 = vlog2.pop %v323
    %v355 = vmul.f32 %v354, 0.6931472
    %vm356 = vcmp.eq.s32.totalorder %v127, %v162
    %vm357 = vcmp.eq.s32.totalorder %v127, %v163
    %vm358 = vcmp.eq.s32.totalorder %v127, %v164
    %vm359 = vcmp.eq.s32.totalorder %v127, %v165
    %vm360 = vcmp.eq.s32.totalorder %v127, %v166
    %vm361 = vcmp.eq.s32.totalorder %v127, %v167
    %vm362 = vcmp.eq.s32.totalorder %v127, %v168
    %vm363 = vcmp.eq.s32.totalorder %v127, %v169
    %vm364 = vcmp.eq.s32.totalorder %v127, %v170
    %vm365 = vcmp.eq.s32.totalorder %v127, %v171
    %vm366 = vcmp.eq.s32.totalorder %v127, %v172
    %vm367 = vcmp.eq.s32.totalorder %v127, %v173
    %vm368 = vcmp.eq.s32.totalorder %v127, %v174
    %vm369 = vcmp.eq.s32.totalorder %v127, %v175
    %vm370 = vcmp.eq.s32.totalorder %v127, %v176
    %vm371 = vcmp.eq.s32.totalorder %v127, %v177
    %v372 = vsel %vm356, %v79, 0.0
    %v373 = vsel %vm357, %v82, 0.0
    %v374 = vsel %vm358, %v85, 0.0
    %v375 = vsel %vm359, %v88, 0.0
    %v376 = vsel %vm360, %v91, 0.0
    %v377 = vsel %vm361, %v94, 0.0
    %v378 = vsel %vm362, %v97, 0.0
    %v379 = vsel %vm363, %v100, 0.0
    %v380 = vsel %vm364, %v103, 0.0
    %v381 = vsel %vm365, %v106, 0.0
    %v382 = vsel %vm366, %v109, 0.0
    %v383 = vsel %vm367, %v112, 0.0
    %v384 = vsel %vm368, %v115, 0.0
    %v385 = vsel %vm369, %v118, 0.0
    %v386 = vsel %vm370, %v121, 0.0
    %v387 = vsel %vm371, %v124, 0.0
    %388 = vadd.xlane.f32.xlu0 %v372
    %v389 = vpop.xlane.xlu0 %388
    %390 = vadd.xlane.f32.xlu0 %v373
    %v391 = vpop.xlane.xlu0 %390
    %392 = vadd.xlane.f32.xlu0 %v374
    %v393 = vpop.xlane.xlu0 %392
    %394 = vadd.xlane.f32.xlu0 %v375
    %v395 = vpop.xlane.xlu0 %394
    %396 = vadd.xlane.f32.xlu0 %v376
    %v397 = vpop.xlane.xlu0 %396
    %398 = vadd.xlane.f32.xlu0 %v377
    %v399 = vpop.xlane.xlu0 %398
    %400 = vadd.xlane.f32.xlu0 %v378
    %v401 = vpop.xlane.xlu0 %400
    %402 = vadd.xlane.f32.xlu0 %v379
    %v403 = vpop.xlane.xlu0 %402
    %404 = vadd.xlane.f32.xlu0 %v380
    %v405 = vpop.xlane.xlu0 %404
    %406 = vadd.xlane.f32.xlu0 %v381
    %v407 = vpop.xlane.xlu0 %406
    %408 = vadd.xlane.f32.xlu0 %v382
    %v409 = vpop.xlane.xlu0 %408
    %410 = vadd.xlane.f32.xlu0 %v383
    %v411 = vpop.xlane.xlu0 %410
    %412 = vadd.xlane.f32.xlu0 %v384
    %v413 = vpop.xlane.xlu0 %412
    %414 = vadd.xlane.f32.xlu0 %v385
    %v415 = vpop.xlane.xlu0 %414
    %416 = vadd.xlane.f32.xlu0 %v386
    %v417 = vpop.xlane.xlu0 %416
    %418 = vadd.xlane.f32.xlu0 %v387
    %v419 = vpop.xlane.xlu0 %418
    %v420 = vmul.f32 %v389, 20.0
    %v421 = vmul.f32 %v391, 20.0
    %v422 = vmul.f32 %v393, 20.0
    %v423 = vmul.f32 %v395, 20.0
    %v424 = vmul.f32 %v397, 20.0
    %v425 = vmul.f32 %v399, 20.0
    %v426 = vmul.f32 %v401, 20.0
    %v427 = vmul.f32 %v403, 20.0
    %v428 = vmul.f32 %v405, 20.0
    %v429 = vmul.f32 %v407, 20.0
    %v430 = vmul.f32 %v409, 20.0
    %v431 = vmul.f32 %v411, 20.0
    %v432 = vmul.f32 %v413, 20.0
    %v433 = vmul.f32 %v415, 20.0
    %v434 = vmul.f32 %v417, 20.0
    %v435 = vmul.f32 %v419, 20.0
    %v436 = vsub.f32 %v420, 20.0
    %v437 = vsub.f32 %v421, 20.0
    %v438 = vsub.f32 %v422, 20.0
    %v439 = vsub.f32 %v423, 20.0
    %v440 = vsub.f32 %v424, 20.0
    %v441 = vsub.f32 %v425, 20.0
    %v442 = vsub.f32 %v426, 20.0
    %v443 = vsub.f32 %v427, 20.0
    %v444 = vsub.f32 %v428, 20.0
    %v445 = vsub.f32 %v429, 20.0
    %v446 = vsub.f32 %v430, 20.0
    %v447 = vsub.f32 %v431, 20.0
    %v448 = vsub.f32 %v432, 20.0
    %v449 = vsub.f32 %v433, 20.0
    %v450 = vsub.f32 %v434, 20.0
    %v451 = vsub.f32 %v435, 20.0
    %vm452 = vcmp.lt.s32.totalorder %v146, %v194
    %vm453 = vcmp.lt.s32.totalorder %v147, %v194
    %vm454 = vcmp.lt.s32.totalorder %v148, %v194
    %vm455 = vcmp.lt.s32.totalorder %v149, %v194
    %vm456 = vcmp.lt.s32.totalorder %v150, %v194
    %vm457 = vcmp.lt.s32.totalorder %v151, %v194
    %vm458 = vcmp.lt.s32.totalorder %v152, %v194
    %vm459 = vcmp.lt.s32.totalorder %v153, %v194
    %vm460 = vcmp.lt.s32.totalorder %v154, %v194
    %vm461 = vcmp.lt.s32.totalorder %v155, %v194
    %vm462 = vcmp.lt.s32.totalorder %v156, %v194
    %vm463 = vcmp.lt.s32.totalorder %v157, %v194
    %vm464 = vcmp.lt.s32.totalorder %v158, %v194
    %vm465 = vcmp.lt.s32.totalorder %v159, %v194
    %vm466 = vcmp.lt.s32.totalorder %v160, %v194
    %vm467 = vcmp.lt.s32.totalorder %v161, %v194
    %v468 = vsub.f32 %v325, %v436
    %v469 = vsub.f32 %v327, %v437
    %v470 = vsub.f32 %v329, %v438
    %v471 = vsub.f32 %v331, %v439
    %v472 = vsub.f32 %v333, %v440
    %v473 = vsub.f32 %v335, %v441
    %v474 = vsub.f32 %v337, %v442
    %v475 = vsub.f32 %v339, %v443
    %v476 = vsub.f32 %v341, %v444
    %v477 = vsub.f32 %v343, %v445
    %v478 = vsub.f32 %v345, %v446
    %v479 = vsub.f32 %v347, %v447
    %v480 = vsub.f32 %v349, %v448
    %v481 = vsub.f32 %v351, %v449
    %v482 = vsub.f32 %v353, %v450
    %v483 = vsub.f32 %v355, %v451
    %v484 = vsel %vm452, %v468, 0.0
    %v485 = vsel %vm453, %v469, 0.0
    %v486 = vsel %vm454, %v470, 0.0
    %v487 = vsel %vm455, %v471, 0.0
    %v488 = vsel %vm456, %v472, 0.0
    %v489 = vsel %vm457, %v473, 0.0
    %v490 = vsel %vm458, %v474, 0.0
    %v491 = vsel %vm459, %v475, 0.0
    %v492 = vsel %vm460, %v476, 0.0
    %v493 = vsel %vm461, %v477, 0.0
    %v494 = vsel %vm462, %v478, 0.0
    %v495 = vsel %vm463, %v479, 0.0
    %v496 = vsel %vm464, %v480, 0.0
    %v497 = vsel %vm465, %v481, 0.0
    %v498 = vsel %vm466, %v482, 0.0
    %v499 = vsel %vm467, %v483, 0.0
    %vm500 = vcmask 7168
    %501 = vst.msk [vmem:[%s2] sm:$0xff] %vm500, %v484
    %502 = vst.msk [vmem:[%s2 + $0x8] sm:$0xff] %vm500, %v485
    %503 = vst.msk [vmem:[%s2 + $0x10] sm:$0xff] %vm500, %v486
    %504 = vst.msk [vmem:[%s2 + $0x18] sm:$0xff] %vm500, %v487
    %505 = vst.msk [vmem:[%s2 + $0x20] sm:$0xff] %vm500, %v488
    %506 = vst.msk [vmem:[%s2 + $0x28] sm:$0xff] %vm500, %v489
    %507 = vst.msk [vmem:[%s2 + $0x30] sm:$0xff] %vm500, %v490
    %508 = vst.msk [vmem:[%s2 + $0x38] sm:$0xff] %vm500, %v491
    %509 = vst.msk [vmem:[%s2 + $0x40] sm:$0xff] %vm500, %v492
    %510 = vst.msk [vmem:[%s2 + $0x48] sm:$0xff] %vm500, %v493
    %511 = vst.msk [vmem:[%s2 + $0x50] sm:$0xff] %vm500, %v494
    %512 = vst.msk [vmem:[%s2 + $0x58] sm:$0xff] %vm500, %v495
    %513 = vst.msk [vmem:[%s2 + $0x60] sm:$0xff] %vm500, %v496
    %514 = vst.msk [vmem:[%s2 + $0x68] sm:$0xff] %vm500, %v497
    %515 = vst.msk [vmem:[%s2 + $0x70] sm:$0xff] %vm500, %v498
    %516 = vst.msk [vmem:[%s2 + $0x78] sm:$0xff] %vm500, %v499
    // Predicated region
    $region10: #{tpu_custom_call.1} parent=1 // pred_check
      _
    $region11: #{tpu_custom_call.1} parent=1 // pred_check_branch
      %518 = sbr.rel (0) target = $region13
    $region12: #{tpu_custom_call.1} parent=1 // pred_region
      _
    $region13: #{tpu_custom_call.1} parent=1 // pred_fallthru
      _
    // Predicated region
    $region14: #{tpu_custom_call.1} parent=1 // pred_check
      _
    $region15: #{tpu_custom_call.1} parent=1 // pred_check_branch
      %520 = sbr.rel (0) target = $region17
    $region16: #{tpu_custom_call.1} parent=1 // pred_region
      _
    $region17: #{tpu_custom_call.1} parent=1 // pred_fallthru
      _
    %521 = vsyncpa [#allocation5], 1

// kernel: tpu_custom_call.1
$region0: #{tpu_custom_call.1}
  #allocation0 [shape = 'u32[]', space=smem, size = 0x4, offset = 0x4, fixed_abs, tag = 'smem constant byte address 0x4 - core index']
  #allocation1 [shape = 'u32[72,128]{1,0:T(1,128)}', space=vmem, size = 0x9000, scoped, tag = 'internal scratch']
  #allocation2 [shape = 's32[1]{0}', space=sflag, size = 0x4, scoped, tag = 'scoped memory for tpu_custom_call.1']
  #allocation3 [shape = 's32[1]{0:T(128)S(6)}', space=smem, size = 0x200, scoped, tag = 'prefetched SMEM operand 0']
  %s0 = inlined_call_operand.<no memory space> [shape: s32[1], index: 0, kind: input, shape index: {}]
  %s1 = inlined_call_operand.hbm [shape: f32[128,128], index: 1, kind: input, shape index: {}]
  %s2 = inlined_call_operand.vmem [shape: f32[128,1], index: 2, kind: output, shape index: {}]
  %s3 = sld [smem:[#allocation0]]
  $region18: #{tpu_custom_call.1} parent=0
    _
  %s5 = ssub.s32 1, %s3
  %s6 = scalar_select 0, %s5, %s3
  %7 = sst [smem:[#allocation3]] %s0
  $region1: #{tpu_custom_call.1} parent=0
    #allocation4 [shape = 'u8[65536]{0}', space=vmem, size = 0x10000, scoped, tag = 'input window, operand 1, single buffered']
    #allocation5 [shape = 's32[1]{0}', space=sflag, size = 0x4, scoped, tag = 'scoped memory for tpu_custom_call.1']
    %8 = vsyncpa [#allocation5], 0
    // Predicated region
    $region2: #{tpu_custom_call.1} parent=1 // pred_check
      _
    $region3: #{tpu_custom_call.1} parent=1 // pred_check_branch
      %10 = sbr.rel (0) target = $region5
    $region4: #{tpu_custom_call.1} parent=1 // pred_region
      %12 = vsyncadd [#allocation5], 0
      %s13 = sshll.u32 %s1, 4
      %s14 = int_to_ptr.hbm [resolvable:$true] %s13
      %s15 = sshll.u32 [#allocation4], 4
      %s16 = int_to_ptr.vmem [resolvable:$true] %s15
      %21 = dma.hbm_to_vmem [thread:$0]  %s14, 2048, %s16, [#allocation5], 128, 128, 8
    $region5: #{tpu_custom_call.1} parent=1 // pred_fallthru
      _
    // Predicated region
    $region6: #{tpu_custom_call.1} parent=1 // pred_check
      _
    $region7: #{tpu_custom_call.1} parent=1 // pred_check_branch
      %23 = sbr.rel (0) target = $region9
    $region8: #{tpu_custom_call.1} parent=1 // pred_region
      %25 = dma.done [#allocation5], 2048
    $region9: #{tpu_custom_call.1} parent=1 // pred_fallthru
      _
    %s26 = sld [smem:[#allocation3]]
    %s27 = smul.u32 0, 128
    %s28 = scalar_lea.vmem [#allocation4], %s27
    %v29 = vld [vmem:[%s28] sm:$0xff]
    %v30 = vld [vmem:[%s28 + $0x8] sm:$0xff]
    %v31 = vld [vmem:[%s28 + $0x10] sm:$0xff]
    %v32 = vld [vmem:[%s28 + $0x18] sm:$0xff]
    %v33 = vld [vmem:[%s28 + $0x20] sm:$0xff]
    %v34 = vld [vmem:[%s28 + $0x28] sm:$0xff]
    %v35 = vld [vmem:[%s28 + $0x30] sm:$0xff]
    %v36 = vld [vmem:[%s28 + $0x38] sm:$0xff]
    %v37 = vld [vmem:[%s28 + $0x40] sm:$0xff]
    %v38 = vld [vmem:[%s28 + $0x48] sm:$0xff]
    %v39 = vld [vmem:[%s28 + $0x50] sm:$0xff]
    %v40 = vld [vmem:[%s28 + $0x58] sm:$0xff]
    %v41 = vld [vmem:[%s28 + $0x60] sm:$0xff]
    %v42 = vld [vmem:[%s28 + $0x68] sm:$0xff]
    %v43 = vld [vmem:[%s28 + $0x70] sm:$0xff]
    %v44 = vld [vmem:[%s28 + $0x78] sm:$0xff]
    %v45 = vld [vmem:[#allocation4] sm:$0xff]
    %v46 = vld [vmem:[#allocation4 + $0x8] sm:$0xff]
    %v47 = vld [vmem:[#allocation4 + $0x10] sm:$0xff]
    %v48 = vld [vmem:[#allocation4 + $0x18] sm:$0xff]
    %v49 = vld [vmem:[#allocation4 + $0x20] sm:$0xff]
    %v50 = vld [vmem:[#allocation4 + $0x28] sm:$0xff]
    %v51 = vld [vmem:[#allocation4 + $0x30] sm:$0xff]
    %v52 = vld [vmem:[#allocation4 + $0x38] sm:$0xff]
    %v53 = vld [vmem:[#allocation4 + $0x40] sm:$0xff]
    %v54 = vld [vmem:[#allocation4 + $0x48] sm:$0xff]
    %v55 = vld [vmem:[#allocation4 + $0x50] sm:$0xff]
    %v56 = vld [vmem:[#allocation4 + $0x58] sm:$0xff]
    %v57 = vld [vmem:[#allocation4 + $0x60] sm:$0xff]
    %v58 = vld [vmem:[#allocation4 + $0x68] sm:$0xff]
    %v59 = vld [vmem:[#allocation4 + $0x70] sm:$0xff]
    %v60 = vld [vmem:[#allocation4 + $0x78] sm:$0xff]
    %61 = vmatpush.xpose.msra.mxu0 %v60
    %62 = vmatpush.xpose.msra.mxu0 %v59
    %63 = vmatpush.xpose.msra.mxu0 %v58
    %64 = vmatpush.xpose.msra.mxu0 %v57
    %65 = vmatpush.xpose.msra.mxu0 %v56
    %66 = vmatpush.xpose.msra.mxu0 %v55
    %67 = vmatpush.xpose.msra.mxu0 %v54
    %68 = vmatpush.xpose.msra.mxu0 %v53
    %69 = vmatpush.xpose.msra.mxu0 %v52
    %70 = vmatpush.xpose.msra.mxu0 %v51
    %71 = vmatpush.xpose.msra.mxu0 %v50
    %72 = vmatpush.xpose.msra.mxu0 %v49
    %73 = vmatpush.xpose.msra.mxu0 %v48
    %74 = vmatpush.xpose.msra.mxu0 %v47
    %75 = vmatpush.xpose.msra.mxu0 %v46
    %76 = vmatpush.xpose.msra.mxu0 %v45
    %77 = vmatmul.f32.gmra.mxu0 %v29
    %v78 = vpop.f32.mrf.mxu0
    %v79 = vadd.f32 0.0, %v78
    %80 = vmatmul.f32.gmra.mxu0 %v30
    %v81 = vpop.f32.mrf.mxu0
    %v82 = vadd.f32 0.0, %v81
    %83 = vmatmul.f32.gmra.mxu0 %v31
    %v84 = vpop.f32.mrf.mxu0
    %v85 = vadd.f32 0.0, %v84
    %86 = vmatmul.f32.gmra.mxu0 %v32
    %v87 = vpop.f32.mrf.mxu0
    %v88 = vadd.f32 0.0, %v87
    %89 = vmatmul.f32.gmra.mxu0 %v33
    %v90 = vpop.f32.mrf.mxu0
    %v91 = vadd.f32 0.0, %v90
    %92 = vmatmul.f32.gmra.mxu0 %v34
    %v93 = vpop.f32.mrf.mxu0
    %v94 = vadd.f32 0.0, %v93
    %95 = vmatmul.f32.gmra.mxu0 %v35
    %v96 = vpop.f32.mrf.mxu0
    %v97 = vadd.f32 0.0, %v96
    %98 = vmatmul.f32.gmra.mxu0 %v36
    %v99 = vpop.f32.mrf.mxu0
    %v100 = vadd.f32 0.0, %v99
    %101 = vmatmul.f32.gmra.mxu0 %v37
    %v102 = vpop.f32.mrf.mxu0
    %v103 = vadd.f32 0.0, %v102
    %104 = vmatmul.f32.gmra.mxu0 %v38
    %v105 = vpop.f32.mrf.mxu0
    %v106 = vadd.f32 0.0, %v105
    %107 = vmatmul.f32.gmra.mxu0 %v39
    %v108 = vpop.f32.mrf.mxu0
    %v109 = vadd.f32 0.0, %v108
    %110 = vmatmul.f32.gmra.mxu0 %v40
    %v111 = vpop.f32.mrf.mxu0
    %v112 = vadd.f32 0.0, %v111
    %113 = vmatmul.f32.gmra.mxu0 %v41
    %v114 = vpop.f32.mrf.mxu0
    %v115 = vadd.f32 0.0, %v114
    %116 = vmatmul.f32.gmra.mxu0 %v42
    %v117 = vpop.f32.mrf.mxu0
    %v118 = vadd.f32 0.0, %v117
    %119 = vmatmul.f32.gmra.mxu0 %v43
    %v120 = vpop.f32.mrf.mxu0
    %v121 = vadd.f32 0.0, %v120
    %122 = vmatmul.f32.gmra.mxu0 %v44
    %v123 = vpop.f32.mrf.mxu0
    %v124 = vadd.f32 0.0, %v123
    %125 = vdwg.mxu0
    %v126 = vlaneseq
    %v127 = vand.u32 %v126, 127
    %v128 = vlaneseq
    %v129 = vshrl.u32 %v128, 7
    %v130 = vadd.s32 %v129, 8
    %v131 = vadd.s32 %v129, 16
    %v132 = vadd.s32 %v129, 24
    %v133 = vadd.s32 %v129, 32
    %v134 = vadd.s32 %v129, 40
    %v135 = vadd.s32 %v129, 48
    %v136 = vadd.s32 %v129, 56
    %v137 = vadd.s32 %v129, 64
    %v138 = vadd.s32 %v129, 72
    %v139 = vadd.s32 %v129, 80
    %v140 = vadd.s32 %v129, 88
    %v141 = vadd.s32 %v129, 96
    %v142 = vadd.s32 %v129, 104
    %v143 = vadd.s32 %v129, 112
    %v144 = vadd.s32 %v129, 120
    %v145 = vstv %s27
    %v146 = vadd.s32 %v145, %v129
    %v147 = vadd.s32 %v145, %v130
    %v148 = vadd.s32 %v145, %v131
    %v149 = vadd.s32 %v145, %v132
    %v150 = vadd.s32 %v145, %v133
    %v151 = vadd.s32 %v145, %v134
    %v152 = vadd.s32 %v145, %v135
    %v153 = vadd.s32 %v145, %v136
    %v154 = vadd.s32 %v145, %v137
    %v155 = vadd.s32 %v145, %v138
    %v156 = vadd.s32 %v145, %v139
    %v157 = vadd.s32 %v145, %v140
    %v158 = vadd.s32 %v145, %v141
    %v159 = vadd.s32 %v145, %v142
    %v160 = vadd.s32 %v145, %v143
    %v161 = vadd.s32 %v145, %v144
    %v162 = vxor.u32 %v146, 1
    %v163 = vxor.u32 %v147, 1
    %v164 = vxor.u32 %v148, 1
    %v165 = vxor.u32 %v149, 1
    %v166 = vxor.u32 %v150, 1
    %v167 = vxor.u32 %v151, 1
    %v168 = vxor.u32 %v152, 1
    %v169 = vxor.u32 %v153, 1
    %v170 = vxor.u32 %v154, 1
    %v171 = vxor.u32 %v155, 1
    %v172 = vxor.u32 %v156, 1
    %v173 = vxor.u32 %v157, 1
    %v174 = vxor.u32 %v158, 1
    %v175 = vxor.u32 %v159, 1
    %v176 = vxor.u32 %v160, 1
    %v177 = vxor.u32 %v161, 1
    %vm178 = vcmp.eq.s32.totalorder %v127, %v146
    %vm179 = vcmp.eq.s32.totalorder %v127, %v147
    %vm180 = vcmp.eq.s32.totalorder %v127, %v148
    %vm181 = vcmp.eq.s32.totalorder %v127, %v149
    %vm182 = vcmp.eq.s32.totalorder %v127, %v150
    %vm183 = vcmp.eq.s32.totalorder %v127, %v151
    %vm184 = vcmp.eq.s32.totalorder %v127, %v152
    %vm185 = vcmp.eq.s32.totalorder %v127, %v153
    %vm186 = vcmp.eq.s32.totalorder %v127, %v154
    %vm187 = vcmp.eq.s32.totalorder %v127, %v155
    %vm188 = vcmp.eq.s32.totalorder %v127, %v156
    %vm189 = vcmp.eq.s32.totalorder %v127, %v157
    %vm190 = vcmp.eq.s32.totalorder %v127, %v158
    %vm191 = vcmp.eq.s32.totalorder %v127, %v159
    %vm192 = vcmp.eq.s32.totalorder %v127, %v160
    %vm193 = vcmp.eq.s32.totalorder %v127, %v161
    %v194 = vstv %s26
    %vm195 = vcmp.ge.s32.totalorder %v127, %v194
    %vm196 = vmor %vm178, %vm195
    %vm197 = vmor %vm179, %vm195
    %vm198 = vmor %vm180, %vm195
    %vm199 = vmor %vm181, %vm195
    %vm200 = vmor %vm182, %vm195
    %vm201 = vmor %vm183, %vm195
    %vm202 = vmor %vm184, %vm195
    %vm203 = vmor %vm185, %vm195
    %vm204 = vmor %vm186, %vm195
    %vm205 = vmor %vm187, %vm195
    %vm206 = vmor %vm188, %vm195
    %vm207 = vmor %vm189, %vm195
    %vm208 = vmor %vm190, %vm195
    %vm209 = vmor %vm191, %vm195
    %vm210 = vmor %vm192, %vm195
    %vm211 = vmor %vm193, %vm195
    %v212 = vmul.f32 %v79, 20.0
    %v213 = vmul.f32 %v82, 20.0
    %v214 = vmul.f32 %v85, 20.0
    %v215 = vmul.f32 %v88, 20.0
    %v216 = vmul.f32 %v91, 20.0
    %v217 = vmul.f32 %v94, 20.0
    %v218 = vmul.f32 %v97, 20.0
    %v219 = vmul.f32 %v100, 20.0
    %v220 = vmul.f32 %v103, 20.0
    %v221 = vmul.f32 %v106, 20.0
    %v222 = vmul.f32 %v109, 20.0
    %v223 = vmul.f32 %v112, 20.0
    %v224 = vmul.f32 %v115, 20.0
    %v225 = vmul.f32 %v118, 20.0
    %v226 = vmul.f32 %v121, 20.0
    %v227 = vmul.f32 %v124, 20.0
    %v228 = vsub.f32 %v212, 20.0
    %v229 = vsub.f32 %v213, 20.0
    %v230 = vsub.f32 %v214, 20.0
    %v231 = vsub.f32 %v215, 20.0
    %v232 = vsub.f32 %v216, 20.0
    %v233 = vsub.f32 %v217, 20.0
    %v234 = vsub.f32 %v218, 20.0
    %v235 = vsub.f32 %v219, 20.0
    %v236 = vsub.f32 %v220, 20.0
    %v237 = vsub.f32 %v221, 20.0
    %v238 = vsub.f32 %v222, 20.0
    %v239 = vsub.f32 %v223, 20.0
    %v240 = vsub.f32 %v224, 20.0
    %v241 = vsub.f32 %v225, 20.0
    %v242 = vsub.f32 %v226, 20.0
    %v243 = vsub.f32 %v227, 20.0
    %v244 = vsel %vm196, -2e+13, %v228
    %v245 = vsel %vm197, -2e+13, %v229
    %v246 = vsel %vm198, -2e+13, %v230
    %v247 = vsel %vm199, -2e+13, %v231
    %v248 = vsel %vm200, -2e+13, %v232
    %v249 = vsel %vm201, -2e+13, %v233
    %v250 = vsel %vm202, -2e+13, %v234
    %v251 = vsel %vm203, -2e+13, %v235
    %v252 = vsel %vm204, -2e+13, %v236
    %v253 = vsel %vm205, -2e+13, %v237
    %v254 = vsel %vm206, -2e+13, %v238
    %v255 = vsel %vm207, -2e+13, %v239
    %v256 = vsel %vm208, -2e+13, %v240
    %v257 = vsel %vm209, -2e+13, %v241
    %v258 = vsel %vm210, -2e+13, %v242
    %v259 = vsel %vm211, -2e+13, %v243
    %v260 = vmul.f32 %v244, 1.442695
    %v261 = vpow.pop %v260
    %v262 = vmul.f32 %v245, 1.442695
    %v263 = vpow.pop %v262
    %v264 = vmul.f32 %v246, 1.442695
    %v265 = vpow.pop %v264
    %v266 = vmul.f32 %v247, 1.442695
    %v267 = vpow.pop %v266
    %v268 = vmul.f32 %v248, 1.442695
    %v269 = vpow.pop %v268
    %v270 = vmul.f32 %v249, 1.442695
    %v271 = vpow.pop %v270
    %v272 = vmul.f32 %v250, 1.442695
    %v273 = vpow.pop %v272
    %v274 = vmul.f32 %v251, 1.442695
    %v275 = vpow.pop %v274
    %v276 = vmul.f32 %v252, 1.442695
    %v277 = vpow.pop %v276
    %v278 = vmul.f32 %v253, 1.442695
    %v279 = vpow.pop %v278
    %v280 = vmul.f32 %v254, 1.442695
    %v281 = vpow.pop %v280
    %v282 = vmul.f32 %v255, 1.442695
    %v283 = vpow.pop %v282
    %v284 = vmul.f32 %v256, 1.442695
    %v285 = vpow.pop %v284
    %v286 = vmul.f32 %v257, 1.442695
    %v287 = vpow.pop %v286
    %v288 = vmul.f32 %v258, 1.442695
    %v289 = vpow.pop %v288
    %v290 = vmul.f32 %v259, 1.442695
    %v291 = vpow.pop %v290
    %292 = vadd.xlane.f32.xlu0 %v261
    %v293 = vpop.xlane.xlu0 %292
    %294 = vadd.xlane.f32.xlu0 %v263
    %v295 = vpop.xlane.xlu0 %294
    %296 = vadd.xlane.f32.xlu0 %v265
    %v297 = vpop.xlane.xlu0 %296
    %298 = vadd.xlane.f32.xlu0 %v267
    %v299 = vpop.xlane.xlu0 %298
    %300 = vadd.xlane.f32.xlu0 %v269
    %v301 = vpop.xlane.xlu0 %300
    %302 = vadd.xlane.f32.xlu0 %v271
    %v303 = vpop.xlane.xlu0 %302
    %304 = vadd.xlane.f32.xlu0 %v273
    %v305 = vpop.xlane.xlu0 %304
    %306 = vadd.xlane.f32.xlu0 %v275
    %v307 = vpop.xlane.xlu0 %306
    %308 = vadd.xlane.f32.xlu0 %v277
    %v309 = vpop.xlane.xlu0 %308
    %310 = vadd.xlane.f32.xlu0 %v279
    %v311 = vpop.xlane.xlu0 %310
    %312 = vadd.xlane.f32.xlu0 %v281
    %v313 = vpop.xlane.xlu0 %312
    %314 = vadd.xlane.f32.xlu0 %v283
    %v315 = vpop.xlane.xlu0 %314
    %316 = vadd.xlane.f32.xlu0 %v285
    %v317 = vpop.xlane.xlu0 %316
    %318 = vadd.xlane.f32.xlu0 %v287
    %v319 = vpop.xlane.xlu0 %318
    %320 = vadd.xlane.f32.xlu0 %v289
    %v321 = vpop.xlane.xlu0 %320
    %322 = vadd.xlane.f32.xlu0 %v291
    %v323 = vpop.xlane.xlu0 %322
    %v324 = vlog2.pop %v293
    %v325 = vmul.f32 %v324, 0.6931472
    %v326 = vlog2.pop %v295
    %v327 = vmul.f32 %v326, 0.6931472
    %v328 = vlog2.pop %v297
    %v329 = vmul.f32 %v328, 0.6931472
    %v330 = vlog2.pop %v299
    %v331 = vmul.f32 %v330, 0.6931472
    %v332 = vlog2.pop %v301
    %v333 = vmul.f32 %v332, 0.6931472
    %v334 = vlog2.pop %v303
    %v335 = vmul.f32 %v334, 0.6931472
    %v336 = vlog2.pop %v305
    %v337 = vmul.f32 %v336, 0.6931472
    %v338 = vlog2.pop %v307
    %v339 = vmul.f32 %v338, 0.6931472
    %v340 = vlog2.pop %v309
    %v341 = vmul.f32 %v340, 0.6931472
    %v342 = vlog2.pop %v311
    %v343 = vmul.f32 %v342, 0.6931472
    %v344 = vlog2.pop %v313
    %v345 = vmul.f32 %v344, 0.6931472
    %v346 = vlog2.pop %v315
    %v347 = vmul.f32 %v346, 0.6931472
    %v348 = vlog2.pop %v317
    %v349 = vmul.f32 %v348, 0.6931472
    %v350 = vlog2.pop %v319
    %v351 = vmul.f32 %v350, 0.6931472
    %v352 = vlog2.pop %v321
    %v353 = vmul.f32 %v352, 0.6931472
    %v354 = vlog2.pop %v323
    %v355 = vmul.f32 %v354, 0.6931472
    %vm356 = vcmp.eq.s32.totalorder %v127, %v162
    %vm357 = vcmp.eq.s32.totalorder %v127, %v163
    %vm358 = vcmp.eq.s32.totalorder %v127, %v164
    %vm359 = vcmp.eq.s32.totalorder %v127, %v165
    %vm360 = vcmp.eq.s32.totalorder %v127, %v166
    %vm361 = vcmp.eq.s32.totalorder %v127, %v167
    %vm362 = vcmp.eq.s32.totalorder %v127, %v168
    %vm363 = vcmp.eq.s32.totalorder %v127, %v169
    %vm364 = vcmp.eq.s32.totalorder %v127, %v170
    %vm365 = vcmp.eq.s32.totalorder %v127, %v171
    %vm366 = vcmp.eq.s32.totalorder %v127, %v172
    %vm367 = vcmp.eq.s32.totalorder %v127, %v173
    %vm368 = vcmp.eq.s32.totalorder %v127, %v174
    %vm369 = vcmp.eq.s32.totalorder %v127, %v175
    %vm370 = vcmp.eq.s32.totalorder %v127, %v176
    %vm371 = vcmp.eq.s32.totalorder %v127, %v177
    %v372 = vsel %vm356, %v79, 0.0
    %v373 = vsel %vm357, %v82, 0.0
    %v374 = vsel %vm358, %v85, 0.0
    %v375 = vsel %vm359, %v88, 0.0
    %v376 = vsel %vm360, %v91, 0.0
    %v377 = vsel %vm361, %v94, 0.0
    %v378 = vsel %vm362, %v97, 0.0
    %v379 = vsel %vm363, %v100, 0.0
    %v380 = vsel %vm364, %v103, 0.0
    %v381 = vsel %vm365, %v106, 0.0
    %v382 = vsel %vm366, %v109, 0.0
    %v383 = vsel %vm367, %v112, 0.0
    %v384 = vsel %vm368, %v115, 0.0
    %v385 = vsel %vm369, %v118, 0.0
    %v386 = vsel %vm370, %v121, 0.0
    %v387 = vsel %vm371, %v124, 0.0
    %388 = vadd.xlane.f32.xlu0 %v372
    %v389 = vpop.xlane.xlu0 %388
    %390 = vadd.xlane.f32.xlu0 %v373
    %v391 = vpop.xlane.xlu0 %390
    %392 = vadd.xlane.f32.xlu0 %v374
    %v393 = vpop.xlane.xlu0 %392
    %394 = vadd.xlane.f32.xlu0 %v375
    %v395 = vpop.xlane.xlu0 %394
    %396 = vadd.xlane.f32.xlu0 %v376
    %v397 = vpop.xlane.xlu0 %396
    %398 = vadd.xlane.f32.xlu0 %v377
    %v399 = vpop.xlane.xlu0 %398
    %400 = vadd.xlane.f32.xlu0 %v378
    %v401 = vpop.xlane.xlu0 %400
    %402 = vadd.xlane.f32.xlu0 %v379
    %v403 = vpop.xlane.xlu0 %402
    %404 = vadd.xlane.f32.xlu0 %v380
    %v405 = vpop.xlane.xlu0 %404
    %406 = vadd.xlane.f32.xlu0 %v381
    %v407 = vpop.xlane.xlu0 %406
    %408 = vadd.xlane.f32.xlu0 %v382
    %v409 = vpop.xlane.xlu0 %408
    %410 = vadd.xlane.f32.xlu0 %v383
    %v411 = vpop.xlane.xlu0 %410
    %412 = vadd.xlane.f32.xlu0 %v384
    %v413 = vpop.xlane.xlu0 %412
    %414 = vadd.xlane.f32.xlu0 %v385
    %v415 = vpop.xlane.xlu0 %414
    %416 = vadd.xlane.f32.xlu0 %v386
    %v417 = vpop.xlane.xlu0 %416
    %418 = vadd.xlane.f32.xlu0 %v387
    %v419 = vpop.xlane.xlu0 %418
    %v420 = vmul.f32 %v389, 20.0
    %v421 = vmul.f32 %v391, 20.0
    %v422 = vmul.f32 %v393, 20.0
    %v423 = vmul.f32 %v395, 20.0
    %v424 = vmul.f32 %v397, 20.0
    %v425 = vmul.f32 %v399, 20.0
    %v426 = vmul.f32 %v401, 20.0
    %v427 = vmul.f32 %v403, 20.0
    %v428 = vmul.f32 %v405, 20.0
    %v429 = vmul.f32 %v407, 20.0
    %v430 = vmul.f32 %v409, 20.0
    %v431 = vmul.f32 %v411, 20.0
    %v432 = vmul.f32 %v413, 20.0
    %v433 = vmul.f32 %v415, 20.0
    %v434 = vmul.f32 %v417, 20.0
    %v435 = vmul.f32 %v419, 20.0
    %v436 = vsub.f32 %v420, 20.0
    %v437 = vsub.f32 %v421, 20.0
    %v438 = vsub.f32 %v422, 20.0
    %v439 = vsub.f32 %v423, 20.0
    %v440 = vsub.f32 %v424, 20.0
    %v441 = vsub.f32 %v425, 20.0
    %v442 = vsub.f32 %v426, 20.0
    %v443 = vsub.f32 %v427, 20.0
    %v444 = vsub.f32 %v428, 20.0
    %v445 = vsub.f32 %v429, 20.0
    %v446 = vsub.f32 %v430, 20.0
    %v447 = vsub.f32 %v431, 20.0
    %v448 = vsub.f32 %v432, 20.0
    %v449 = vsub.f32 %v433, 20.0
    %v450 = vsub.f32 %v434, 20.0
    %v451 = vsub.f32 %v435, 20.0
    %vm452 = vcmp.lt.s32.totalorder %v146, %v194
    %vm453 = vcmp.lt.s32.totalorder %v147, %v194
    %vm454 = vcmp.lt.s32.totalorder %v148, %v194
    %vm455 = vcmp.lt.s32.totalorder %v149, %v194
    %vm456 = vcmp.lt.s32.totalorder %v150, %v194
    %vm457 = vcmp.lt.s32.totalorder %v151, %v194
    %vm458 = vcmp.lt.s32.totalorder %v152, %v194
    %vm459 = vcmp.lt.s32.totalorder %v153, %v194
    %vm460 = vcmp.lt.s32.totalorder %v154, %v194
    %vm461 = vcmp.lt.s32.totalorder %v155, %v194
    %vm462 = vcmp.lt.s32.totalorder %v156, %v194
    %vm463 = vcmp.lt.s32.totalorder %v157, %v194
    %vm464 = vcmp.lt.s32.totalorder %v158, %v194
    %vm465 = vcmp.lt.s32.totalorder %v159, %v194
    %vm466 = vcmp.lt.s32.totalorder %v160, %v194
    %vm467 = vcmp.lt.s32.totalorder %v161, %v194
    %v468 = vsub.f32 %v325, %v436
    %v469 = vsub.f32 %v327, %v437
    %v470 = vsub.f32 %v329, %v438
    %v471 = vsub.f32 %v331, %v439
    %v472 = vsub.f32 %v333, %v440
    %v473 = vsub.f32 %v335, %v441
    %v474 = vsub.f32 %v337, %v442
    %v475 = vsub.f32 %v339, %v443
    %v476 = vsub.f32 %v341, %v444
    %v477 = vsub.f32 %v343, %v445
    %v478 = vsub.f32 %v345, %v446
    %v479 = vsub.f32 %v347, %v447
    %v480 = vsub.f32 %v349, %v448
    %v481 = vsub.f32 %v351, %v449
    %v482 = vsub.f32 %v353, %v450
    %v483 = vsub.f32 %v355, %v451
    %v484 = vsel %vm452, %v468, 0.0
    %v485 = vsel %vm453, %v469, 0.0
    %v486 = vsel %vm454, %v470, 0.0
    %v487 = vsel %vm455, %v471, 0.0
    %v488 = vsel %vm456, %v472, 0.0
    %v489 = vsel %vm457, %v473, 0.0
    %v490 = vsel %vm458, %v474, 0.0
    %v491 = vsel %vm459, %v475, 0.0
    %v492 = vsel %vm460, %v476, 0.0
    %v493 = vsel %vm461, %v477, 0.0
    %v494 = vsel %vm462, %v478, 0.0
    %v495 = vsel %vm463, %v479, 0.0
    %v496 = vsel %vm464, %v480, 0.0
    %v497 = vsel %vm465, %v481, 0.0
    %v498 = vsel %vm466, %v482, 0.0
    %v499 = vsel %vm467, %v483, 0.0
    %vm500 = vcmask 7168
    %501 = vst.msk [vmem:[%s2] sm:$0xff] %vm500, %v484
    %502 = vst.msk [vmem:[%s2 + $0x8] sm:$0xff] %vm500, %v485
    %503 = vst.msk [vmem:[%s2 + $0x10] sm:$0xff] %vm500, %v486
    %504 = vst.msk [vmem:[%s2 + $0x18] sm:$0xff] %vm500, %v487
    %505 = vst.msk [vmem:[%s2 + $0x20] sm:$0xff] %vm500, %v488
    %506 = vst.msk [vmem:[%s2 + $0x28] sm:$0xff] %vm500, %v489
    %507 = vst.msk [vmem:[%s2 + $0x30] sm:$0xff] %vm500, %v490
    %508 = vst.msk [vmem:[%s2 + $0x38] sm:$0xff] %vm500, %v491
    %509 = vst.msk [vmem:[%s2 + $0x40] sm:$0xff] %vm500, %v492
    %510 = vst.msk [vmem:[%s2 + $0x48] sm:$0xff] %vm500, %v493
    %511 = vst.msk [vmem:[%s2 + $0x50] sm:$0xff] %vm500, %v494
    %512 = vst.msk [vmem:[%s2 + $0x58] sm:$0xff] %vm500, %v495
    %513 = vst.msk [vmem:[%s2 + $0x60] sm:$0xff] %vm500, %v496
    %514 = vst.msk [vmem:[%s2 + $0x68] sm:$0xff] %vm500, %v497
    %515 = vst.msk [vmem:[%s2 + $0x70] sm:$0xff] %vm500, %v498
    %516 = vst.msk [vmem:[%s2 + $0x78] sm:$0xff] %vm500, %v499
    // Predicated region
    $region10: #{tpu_custom_call.1} parent=1 // pred_check
      _
    $region11: #{tpu_custom_call.1} parent=1 // pred_check_branch
      %518 = sbr.rel (0) target = $region13
    $region12: #{tpu_custom_call.1} parent=1 // pred_region
      _
    $region13: #{tpu_custom_call.1} parent=1 // pred_fallthru
      _
    // Predicated region
    $region14: #{tpu_custom_call.1} parent=1 // pred_check
      _
    $region15: #{tpu_custom_call.1} parent=1 // pred_check_branch
      %520 = sbr.rel (0) target = $region17
    $region16: #{tpu_custom_call.1} parent=1 // pred_region
      _
    $region17: #{tpu_custom_call.1} parent=1 // pred_fallthru
      _
    %521 = vsyncpa [#allocation5], 1

</llo_original>
